<compile_context>
chip_gen: v6e
topology: v6e:2x2x1
jax: 0.10.0
libtpu: 0.0.40
codegen_flags: <defaults>
</compile_context>

<pallas_src>
import functools
import math

import jax
import jax.numpy as jnp
from jax.experimental import pallas as pl
from jax.experimental.pallas import tpu as pltpu


def _patch_merge_kernel(x_ref, wg_ref, bias_ref, o_ref, *, eps, inv_4c,
                        matmul_dtype):
    # x_ref:    (tr, 2, W2, 2C)  one contiguous row-pair tile; axis 1 is the
    #                            input-row parity, last axis is [even col C |
    #                            odd col C].
    # wg_ref:   (2, 2C, 2C)      gamma-folded, parity-permuted weight.T slabs.
    # bias_ref: (1, 2C)          beta @ weight.T (f32).
    # o_ref:    (tr*W2, 2C)
    tr, _, w2, c2 = x_ref.shape
    n = tr * w2

    x_all = x_ref[...]                                        # one block load
    xe = x_all[:, 0].astype(jnp.float32).reshape(n, c2)       # [x0 | x2]
    xo = x_all[:, 1].astype(jnp.float32).reshape(n, c2)       # [x1 | x3]

    # LayerNorm statistics over the virtual 4C axis from the two 2C halves.
    total = (jnp.sum(xe, axis=-1, keepdims=True)
             + jnp.sum(xo, axis=-1, keepdims=True))
    mean = total * inv_4c
    de = xe - mean
    do = xo - mean
    var = (jnp.sum(de * de, axis=-1, keepdims=True)
           + jnp.sum(do * do, axis=-1, keepdims=True)) * inv_4c
    inv = jax.lax.rsqrt(var + eps)                            # per-token scale

    # Affine is folded into wg / bias; inv commutes past the channel
    # contraction, so it is applied once in the epilogue.  Two K=2C dots against
    # the resident weight amortize MXU weight pushes over a large M = tr*W2.
    acc = jnp.dot(de.astype(matmul_dtype), wg_ref[0],
                  preferred_element_type=jnp.float32)
    acc = acc + jnp.dot(do.astype(matmul_dtype), wg_ref[1],
                        preferred_element_type=jnp.float32)
    o_ref[...] = (acc * inv + bias_ref[...]).astype(o_ref.dtype)


def _vmem_capacity_bytes():
    """Best-effort per-core VMEM capacity (falls back to the v7x 64 MiB)."""
    try:
        info = pltpu.get_tpu_info()
        cap = getattr(info, "vmem_capacity_bytes", None)
        if cap:
            return int(cap)
    except Exception:
        pass
    return 64 * 1024 * 1024


def _pick_tr(R, W2, align, pref, tr_cap):
    """Pick the row-pair tile: aligned (tr*W2 % sublane == 0), VMEM-bounded,
    preferring >=2 and an even number of grid steps (v7x dual-TensorCore)."""
    tr_cap = max(1, tr_cap)
    if tr_cap >= R:
        # Everything fits in one block; prefer two balanced steps so the
        # "parallel" axis can shard across two TensorCores (per-step overhead
        # ~0.35us, negligible on single-core chips).
        half = pl.cdiv(pl.cdiv(R, 2), align) * align
        if align <= half < R:
            return half
        return R
    tr = (tr_cap // align) * align
    if tr <= 0:
        return min(align, R)            # alignment beats the budget slightly
    if pref > align and tr >= pref:     # MXU-row-friendly (128-row) multiples
        tr = (tr // pref) * pref
    steps = pl.cdiv(R, tr)
    if steps > 1 and steps % 2 == 1:    # even step count balances v7x cores
        tr2 = pl.cdiv(pl.cdiv(R, steps + 1), align) * align
        if align <= tr2 <= tr:
            tr = tr2
    return tr


def patch_merging_forward(x, H, W, gamma, beta, weight, *, eps=1e-5,
                          tokens_per_step=4096, matmul_dtype=None,
                          out_dtype=None):
    """Pallas implementation of Swin PatchMerging.forward.

    Args:
      x:      (B, H*W, C) input features.
      H, W:   spatial resolution (static).
      gamma:  (4C,) LayerNorm weight.
      beta:   (4C,) LayerNorm bias.
      weight: (2C, 4C) torch-style nn.Linear weight (out_features, in_features).
      eps:    LayerNorm epsilon.
      matmul_dtype: dtype fed to the MXU; defaults to weight.dtype.  Pass
                    jnp.bfloat16 for the fast path when weights are f32
                    (recommended at the largest Swin stages).
      out_dtype: output dtype; defaults to x.dtype (bf16 cuts store traffic).

    Returns:
      (B, ceil(H/2)*ceil(W/2), 2C)
    """
    B, L, C = x.shape
    assert L == H * W, "input feature has wrong size"
    c2 = 2 * C          # channels per row-parity half of a merged token
    c_out = 2 * C       # output channels
    c4 = 4 * C

    if matmul_dtype is None:
        matmul_dtype = weight.dtype
    if out_dtype is None:
        out_dtype = x.dtype

    x = x.reshape(B, H, W, C)
    pad_h, pad_w = H % 2, W % 2
    if pad_h or pad_w:
        # Matches torch F.pad(x, (0, 0, 0, W % 2, 0, H % 2)).
        x = jnp.pad(x, ((0, 0), (0, pad_h), (0, pad_w), (0, 0)))
    Hp, Wp = H + pad_h, W + pad_w
    H2, W2 = Hp // 2, Wp // 2
    R = B * H2                       # number of merged-row "row pairs"

    # Free (metadata-only) view: (B, Hp, Wp, C) -> (R, 2, W2, 2C).
    #   axis 1 = input-row parity (0: even rows -> x0/x2, 1: odd rows -> x1/x3)
    #   last axis = [even-column C channels | odd-column C channels]
    xv = x.reshape(R, 2, W2, c2)

    # --- Parameter folding (done once, in f32) ------------------------------
    #   even-row half carries original channels [0:C] (x0) and [2C:3C] (x2)
    #   odd-row  half carries original channels [C:2C] (x1) and [3C:4C] (x3)
    w_t = weight.T.astype(jnp.float32)                           # (4C, 2C)
    g = gamma.astype(jnp.float32)
    wg = jnp.stack([
        jnp.concatenate([g[0 * C:1 * C, None] * w_t[0 * C:1 * C],
                         g[2 * C:3 * C, None] * w_t[2 * C:3 * C]], axis=0),
        jnp.concatenate([g[1 * C:2 * C, None] * w_t[1 * C:2 * C],
                         g[3 * C:4 * C, None] * w_t[3 * C:4 * C]], axis=0),
    ]).astype(matmul_dtype)                                      # (2, 2C, 2C)
    bias = (beta.astype(jnp.float32) @ w_t).reshape(1, c_out)    # (1, 2C) f32

    # --- Tile sizing: aligned, generation-aware VMEM budget -----------------
    in_it = jnp.dtype(x.dtype).itemsize
    out_it = jnp.dtype(out_dtype).itemsize
    md_it = jnp.dtype(matmul_dtype).itemsize

    sub_req = max(8, 32 // out_it)                  # sublane tile of out dtype
    align = sub_req // math.gcd(W2, sub_req)        # tr multiple -> tr*W2 % sub
    pref_rows = 128 // math.gcd(W2, 128)            # tr multiple -> 128 MXU rows
    pref = align * pref_rows // math.gcd(align, pref_rows)

    w_bytes = wg.size * md_it                       # Buffered(1): single copy
    bias_bytes = bias.size * 4
    per_token = (4 * c2 * in_it                     # input block, 2 buffers
                 + 2 * c_out * out_it               # output block, 2 buffers
                 + 16 * c2 + 4 * c_out              # xe/xo/de/do f32 + f32 acc
                 + (2 * c2 * md_it if md_it != 4 else 0))   # MXU-dtype casts
    cap = _vmem_capacity_bytes()                    # 64 MiB v7x, 128 MiB v5e/v6e
    vmem_limit = min(max(cap - (16 << 20), 32 << 20), 100 << 20)
    budget = int(vmem_limit * 0.9)
    tr_budget = max(1, (budget - w_bytes - bias_bytes) // (W2 * per_token))
    tr_cap = min(R, max(1, tokens_per_step // max(W2, 1)), tr_budget)
    tr = _pick_tr(R, W2, align, pref, tr_cap)
    grid = (pl.cdiv(R, tr),)

    # Note: Pallas pads the final partial row-pair block; all in-kernel math is
    # row-independent and the edge store is masked, so padded-row garbage never
    # contaminates valid tokens.
    n_tok = R * W2
    cost = pl.CostEstimate(
        flops=2 * n_tok * c4 * c_out,
        transcendentals=n_tok,
        bytes_accessed=(xv.size * in_it + n_tok * c_out * out_it
                        + wg.size * md_it + bias.size * 4),
    )

    out_flat = pl.pallas_call(
        functools.partial(_patch_merge_kernel, eps=float(eps),
                          inv_4c=1.0 / float(c4), matmul_dtype=matmul_dtype),
        out_shape=jax.ShapeDtypeStruct((n_tok, c_out), out_dtype),
        grid_spec=pltpu.PrefetchScalarGridSpec(
            num_scalar_prefetch=0,
            grid=grid,
            in_specs=[
                # One contiguous (tr, 2, W2, 2C) block per step (both parities).
                pl.BlockSpec((tr, 2, W2, c2), lambda i: (i, 0, 0, 0)),
                # Resident gamma-folded weight: constant index, single-buffered.
                pl.BlockSpec((2, c2, c_out), lambda i: (0, 0, 0),
                             pipeline_mode=pl.Buffered(buffer_count=1)),
                # Tiny f32 bias (beta @ W.T).
                pl.BlockSpec((1, c_out), lambda i: (0, 0)),
            ],
            out_specs=pl.BlockSpec((tr * W2, c_out), lambda i: (i, 0)),
        ),
        compiler_params=pltpu.CompilerParams(
            dimension_semantics=("parallel",),
            vmem_limit_bytes=int(vmem_limit),
        ),
        cost_estimate=cost,
    )(xv, wg, bias)

    return out_flat.reshape(B, H2 * W2, c_out)


def _reference_forward(x, H, W, gamma, beta, weight, eps=1e-5):
    """Pure-JAX reference mirroring the PyTorch module semantics (f32)."""
    B, L, C = x.shape
    x = x.astype(jnp.float32).reshape(B, H, W, C)
    pad_h, pad_w = H % 2, W % 2
    if pad_h or pad_w:
        x = jnp.pad(x, ((0, 0), (0, pad_h), (0, pad_w), (0, 0)))
    x0 = x[:, 0::2, 0::2, :]
    x1 = x[:, 1::2, 0::2, :]
    x2 = x[:, 0::2, 1::2, :]
    x3 = x[:, 1::2, 1::2, :]
    x = jnp.concatenate([x0, x1, x2, x3], axis=-1)
    B2, H2, W2, C4 = x.shape
    x = x.reshape(B2, H2 * W2, C4)
    mean = jnp.mean(x, axis=-1, keepdims=True)
    var = jnp.mean((x - mean) ** 2, axis=-1, keepdims=True)
    xn = (x - mean) * jax.lax.rsqrt(var + eps)
    xn = xn * gamma.astype(jnp.float32) + beta.astype(jnp.float32)
    return xn @ weight.T.astype(jnp.float32)


if __name__ == "__main__":
    # Small shapes consistent with the module: dim=C=32, H=W=16, B=2.
    B, H, W, C = 2, 16, 16, 32

    key = jax.random.PRNGKey(0)
    kx, kw, kg, kb = jax.random.split(key, 4)

    x = jax.random.normal(kx, (B, H * W, C), dtype=jnp.float32)
    # Shapes from PatchMerging.__init__: Linear(4C, 2C, bias=False), LayerNorm(4C).
    weight = jax.random.normal(kw, (2 * C, 4 * C), dtype=jnp.float32) * 0.02
    gamma = 1.0 + 0.1 * jax.random.normal(kg, (4 * C,), dtype=jnp.float32)
    beta = 0.1 * jax.random.normal(kb, (4 * C,), dtype=jnp.float32)

    fwd = jax.jit(patch_merging_forward, static_argnums=(1, 2))

    # f32 path (default torch-module numerics, LN affine folded into weights).
    out = jax.block_until_ready(fwd(x, H, W, gamma, beta, weight))
    ref = _reference_forward(x, H, W, gamma, beta, weight)
    assert out.shape == (B, (H // 2) * (W // 2), 2 * C), out.shape
    err = float(jnp.max(jnp.abs(out.astype(jnp.float32) - ref)))
    assert err < 5e-4, err

    # Odd H/W -> exercises the bottom/right zero-padding path.
    Ho = Wo = 15
    x_odd = jax.random.normal(kx, (1, Ho * Wo, C), dtype=jnp.float32)
    out_o = jax.block_until_ready(fwd(x_odd, Ho, Wo, gamma, beta, weight))
    ref_o = _reference_forward(x_odd, Ho, Wo, gamma, beta, weight)
    assert out_o.shape == (1, 8 * 8, 2 * C), out_o.shape
    err_o = float(jnp.max(jnp.abs(out_o.astype(jnp.float32) - ref_o)))
    assert err_o < 5e-4, err_o

    # bf16 end-to-end path (MXU-native matmul, halved HBM traffic).
    out_bf = jax.block_until_ready(
        fwd(x.astype(jnp.bfloat16), H, W, gamma.astype(jnp.bfloat16),
            beta.astype(jnp.bfloat16), weight.astype(jnp.bfloat16)))
    assert out_bf.shape == out.shape
    # bf16 quantization of inputs/weights dominates the error budget here.
    err_bf = float(jnp.max(jnp.abs(out_bf.astype(jnp.float32) - ref)))
    assert err_bf < 1e-1, err_bf

    print("KERNEL_OK")
</pallas_src>

<mosaic_0001>
module attributes {stable_mosaic.version = 11 : i64} {
  func.func @_patch_merge_kernel(%arg0: i32, %arg1: memref<8x2x8x64xf32, #tpu.memory_space<vmem>>, %arg2: memref<2x64x64xf32, #tpu.memory_space<vmem>>, %arg3: memref<1x64xf32, #tpu.memory_space<vmem>>, %arg4: memref<64x64xf32, #tpu.memory_space<vmem>>) attributes {dimension_semantics = [#tpu.dimension_semantics<parallel>], iteration_bounds = array<i64: 2>, scalar_prefetch = 0 : i64, scratch_operands = 0 : i64, tpu.core_type = #tpu.core_type<tc>, window_params = [{transform_indices = @transform_0, window_bounds = array<i64: 8, 2, 8, 64>}, {pipeline_mode = #tpu.pipeline_mode<synchronous>, transform_indices = @transform_1, window_bounds = array<i64: 2, 64, 64>}, {pipeline_mode = #tpu.pipeline_mode<synchronous>, transform_indices = @transform_2, window_bounds = array<i64: 1, 64>}, {transform_indices = @transform_3, window_bounds = array<i64: 64, 64>}]} {
    %c0 = arith.constant 0 : index
    %c0_0 = arith.constant 0 : index
    %c0_1 = arith.constant 0 : index
    %c0_2 = arith.constant 0 : index
    %0 = vector.load %arg1[%c0, %c0_0, %c0_1, %c0_2] : memref<8x2x8x64xf32, #tpu.memory_space<vmem>>, vector<8x2x8x64xf32>
    %1 = vector.extract_strided_slice %0 {offsets = [0, 0, 0, 0], sizes = [8, 1, 8, 64], strides = [1, 1, 1, 1]} : vector<8x2x8x64xf32> to vector<8x1x8x64xf32>
    %2 = vector.shape_cast %1 : vector<8x1x8x64xf32> to vector<8x8x64xf32>
    %3 = vector.shape_cast %2 : vector<8x8x64xf32> to vector<64x64xf32>
    %4 = vector.extract_strided_slice %0 {offsets = [0, 1, 0, 0], sizes = [8, 1, 8, 64], strides = [1, 1, 1, 1]} : vector<8x2x8x64xf32> to vector<8x1x8x64xf32>
    %5 = vector.shape_cast %4 : vector<8x1x8x64xf32> to vector<8x8x64xf32>
    %6 = vector.shape_cast %5 : vector<8x8x64xf32> to vector<64x64xf32>
    %cst = arith.constant dense<0.000000e+00> : vector<64xf32>
    %7 = vector.multi_reduction <add>, %3, %cst [1] : vector<64x64xf32> to vector<64xf32>
    %8 = vector.shape_cast %7 : vector<64xf32> to vector<64x1xf32>
    %cst_3 = arith.constant dense<0.000000e+00> : vector<64xf32>
    %9 = vector.multi_reduction <add>, %6, %cst_3 [1] : vector<64x64xf32> to vector<64xf32>
    %10 = vector.shape_cast %9 : vector<64xf32> to vector<64x1xf32>
    %11 = arith.addf %8, %10 : vector<64x1xf32>
    %cst_4 = arith.constant 7.812500e-03 : f32
    %12 = vector.broadcast %cst_4 : f32 to vector<64x1xf32>
    %13 = arith.mulf %11, %12 : vector<64x1xf32>
    %14 = vector.broadcast %13 : vector<64x1xf32> to vector<64x64xf32>
    %15 = arith.subf %3, %14 : vector<64x64xf32>
    %16 = vector.broadcast %13 : vector<64x1xf32> to vector<64x64xf32>
    %17 = arith.subf %6, %16 : vector<64x64xf32>
    %18 = arith.mulf %15, %15 : vector<64x64xf32>
    %cst_5 = arith.constant dense<0.000000e+00> : vector<64xf32>
    %19 = vector.multi_reduction <add>, %18, %cst_5 [1] : vector<64x64xf32> to vector<64xf32>
    %20 = vector.shape_cast %19 : vector<64xf32> to vector<64x1xf32>
    %21 = arith.mulf %17, %17 : vector<64x64xf32>
    %cst_6 = arith.constant dense<0.000000e+00> : vector<64xf32>
    %22 = vector.multi_reduction <add>, %21, %cst_6 [1] : vector<64x64xf32> to vector<64xf32>
    %23 = vector.shape_cast %22 : vector<64xf32> to vector<64x1xf32>
    %24 = arith.addf %20, %23 : vector<64x1xf32>
    %cst_7 = arith.constant 7.812500e-03 : f32
    %25 = vector.broadcast %cst_7 : f32 to vector<64x1xf32>
    %26 = arith.mulf %24, %25 : vector<64x1xf32>
    %cst_8 = arith.constant 9.99999974E-6 : f32
    %27 = vector.broadcast %cst_8 : f32 to vector<64x1xf32>
    %28 = arith.addf %26, %27 : vector<64x1xf32>
    %29 = math.rsqrt %28 : vector<64x1xf32>
    %c0_9 = arith.constant 0 : index
    %c0_10 = arith.constant 0 : index
    %c0_11 = arith.constant 0 : index
    %30 = vector.load %arg2[%c0_9, %c0_10, %c0_11] : memref<2x64x64xf32, #tpu.memory_space<vmem>>, vector<1x64x64xf32>
    %31 = vector.shape_cast %30 : vector<1x64x64xf32> to vector<64x64xf32>
    %cst_12 = arith.constant dense<0.000000e+00> : vector<64x64xf32>
    %32 = tpu.matmul %15, %31, %cst_12 {dimension_numbers = #tpu.dot_dimension_numbers<[1], [0], [0], [1], [0, 0, 1, 1], [], []>} : vector<64x64xf32>, vector<64x64xf32>, vector<64x64xf32> -> vector<64x64xf32>
    %c1 = arith.constant 1 : index
    %c0_13 = arith.constant 0 : index
    %c0_14 = arith.constant 0 : index
    %33 = vector.load %arg2[%c1, %c0_13, %c0_14] : memref<2x64x64xf32, #tpu.memory_space<vmem>>, vector<1x64x64xf32>
    %34 = vector.shape_cast %33 : vector<1x64x64xf32> to vector<64x64xf32>
    %cst_15 = arith.constant dense<0.000000e+00> : vector<64x64xf32>
    %35 = tpu.matmul %17, %34, %cst_15 {dimension_numbers = #tpu.dot_dimension_numbers<[1], [0], [0], [1], [0, 0, 1, 1], [], []>} : vector<64x64xf32>, vector<64x64xf32>, vector<64x64xf32> -> vector<64x64xf32>
    %36 = arith.addf %32, %35 : vector<64x64xf32>
    %37 = vector.broadcast %29 : vector<64x1xf32> to vector<64x64xf32>
    %38 = arith.mulf %36, %37 : vector<64x64xf32>
    %c0_16 = arith.constant 0 : index
    %c0_17 = arith.constant 0 : index
    %39 = vector.load %arg3[%c0_16, %c0_17] : memref<1x64xf32, #tpu.memory_space<vmem>>, vector<1x64xf32>
    %40 = vector.broadcast %39 : vector<1x64xf32> to vector<64x64xf32>
    %41 = arith.addf %38, %40 : vector<64x64xf32>
    %c0_18 = arith.constant 0 : index
    %c0_19 = arith.constant 0 : index
    %42 = vector.load %arg4[%c0_18, %c0_19] : memref<64x64xf32, #tpu.memory_space<vmem>>, vector<64x64xf32>
    tpu.vector_store %arg4[%c0_18, %c0_19], %41 {strides = array<i32>} : memref<64x64xf32, #tpu.memory_space<vmem>>, vector<64x64xf32>,
    return
  }
  func.func @transform_0(%arg0: i32) -> (i32, i32, i32, i32) {
    %c0_i32 = arith.constant 0 : i32
    %c0_i32_0 = arith.constant 0 : i32
    %c0_i32_1 = arith.constant 0 : i32
    %c0_i32_2 = arith.constant 0 : i32
    return %arg0, %c0_i32, %c0_i32_0, %c0_i32_1 : i32, i32, i32, i32
  }
  func.func @transform_1(%arg0: i32) -> (i32, i32, i32) {
    %c0_i32 = arith.constant 0 : i32
    %c0_i32_0 = arith.constant 0 : i32
    %c0_i32_1 = arith.constant 0 : i32
    %c0_i32_2 = arith.constant 0 : i32
    return %c0_i32, %c0_i32_0, %c0_i32_1 : i32, i32, i32
  }
  func.func @transform_2(%arg0: i32) -> (i32, i32) {
    %c0_i32 = arith.constant 0 : i32
    %c0_i32_0 = arith.constant 0 : i32
    %c0_i32_1 = arith.constant 0 : i32
    return %c0_i32, %c0_i32_0 : i32, i32
  }
  func.func @transform_3(%arg0: i32) -> (i32, i32) {
    %c0_i32 = arith.constant 0 : i32
    %c0_i32_0 = arith.constant 0 : i32
    return %arg0, %c0_i32 : i32, i32
  }
}

</mosaic_0001>

<llo_original>
// kernel: patch_merging_forward.1
$region0: #{patch_merging_forward.1}
  #allocation0 [shape = 'u32[]', space=smem, size = 0x4, offset = 0x4, fixed_abs, tag = 'smem constant byte address 0x4 - core index']
  #allocation1 [shape = 'u32[144,128]{1,0:T(1,128)}', space=vmem, size = 0x12000, scoped, tag = 'internal scratch']
  %s0 = inlined_call_operand.vmem [shape: f32[16,2,8,64], index: 0, kind: input, shape index: {}]
  %s1 = inlined_call_operand.vmem [shape: f32[2,64,64], index: 1, kind: input, shape index: {}]
  %s2 = inlined_call_operand.vmem [shape: f32[1,64], index: 2, kind: input, shape index: {}]
  %s3 = inlined_call_operand.hbm [shape: f32[128,64], index: 3, kind: output, shape index: {}]
  %s4 = sld [smem:[#allocation0]]
  $region45: #{patch_merging_forward.1} parent=0
    _
  %s6 = ssub.s32 1, %s4
  %s7 = scalar_select 0, %s6, %s4
  $region1: #{patch_merging_forward.1} parent=0
    #allocation2 [shape = 'u8[65536]{0}', space=vmem, size = 0x10000, scoped, tag = 'output window, operand 0']
    #allocation3 [shape = 's32[2]{0}', space=sflag, size = 0x8, scoped, tag = 'scoped memory for patch_merging_forward.1']
    %8 = vsyncpa [#allocation3], 0
    %s9 = scalar_lea.sflag [#allocation3], 1
    %10 = vsyncpa %s9, 0
    loop: start=0, step=1, limit=4
    $region2: #{patch_merging_forward.1} parent=1 // loop_pre_header
      _
    $region3: #{patch_merging_forward.1} parent=1 // loop_header
      %s12 = sphi 0, %s16
      %p13 = scmp.ge.s32.totalorder %s12, 4
      %s22 = sphi 0, %s24
      %s25 = sphi 0, %s22
      %s26 = sphi 0, %s25
      %s42 = sphi 0, %s26
      %s46 = sphi 0, %s46
      %s48 = sphi 0, %s46
      %s49 = sphi 0, %s48
      %s63 = sphi 0, %s49
      %s67 = sphi 0, %s67
      %s69 = sphi 0, %s67
      %s70 = sphi 0, %s69
      %s84 = sphi 0, %s70
      %s90 = sphi 0, %s92
      %s93 = sphi 0, %s90
      %s94 = sphi 0, %s93
      %s110 = sphi 0, %s94
    $region4: #{patch_merging_forward.1} parent=1 // loop_header_branch
      %15 = sbr.rel (%p13) target = $region8
    $region5: #{patch_merging_forward.1} parent=1 // loop_body
      %s17 = ssub.s32 %s12, 1
      %s18 = ssub.s32 %s12, 2
      %s19 = sadd.s32 %s12, 1
      %s20 = ssub.s32 %s12, %s19
      %p21 = scmp.eq.s32.totalorder %s20, 0
      %s23 = sadd.s32 %s22, 1
      %s24 = scalar_select %p21, %s22, %s23
      %p27 = pneg %p21
      %p28 = scmp.eq.s32.totalorder %s12, 1
      %p29 = por %p27, %p28
      %p30 = scmp.ne.s32.totalorder %s22, %s25
      %p31 = scmp.eq.s32.totalorder %s12, 0
      %p32 = por %p30, %p31
      %p33 = scmp.ne.s32.totalorder %s22, %s25
      %p34 = scmp.eq.s32.totalorder %s17, 1
      %p35 = por %p33, %p34
      %p36 = scmp.ne.s32.totalorder %s25, %s26
      %p37 = scmp.eq.s32.totalorder %s17, 0
      %p38 = por %p36, %p37
      %p39 = scmp.ne.s32.totalorder %s25, %s26
      %p40 = scmp.eq.s32.totalorder %s18, 1
      %p41 = por %p39, %p40
      %p43 = scmp.ne.s32.totalorder %s26, %s42
      %p44 = scmp.eq.s32.totalorder %s18, 0
      %p45 = por %p43, %p44
      %s47 = sadd.s32 %s46, 1
      %p50 = scmp.eq.s32.totalorder %s12, 1
      %p51 = scmp.ne.s32.totalorder %s46, %s48
      %p52 = scmp.eq.s32.totalorder %s12, 0
      %p53 = por %p51, %p52
      %p54 = scmp.ne.s32.totalorder %s46, %s48
      %p55 = scmp.eq.s32.totalorder %s17, 1
      %p56 = por %p54, %p55
      %p57 = scmp.ne.s32.totalorder %s48, %s49
      %p58 = scmp.eq.s32.totalorder %s17, 0
      %p59 = por %p57, %p58
      %p60 = scmp.ne.s32.totalorder %s48, %s49
      %p61 = scmp.eq.s32.totalorder %s18, 1
      %p62 = por %p60, %p61
      %p64 = scmp.ne.s32.totalorder %s49, %s63
      %p65 = scmp.eq.s32.totalorder %s18, 0
      %p66 = por %p64, %p65
      %s68 = sadd.s32 %s67, 1
      %p71 = scmp.eq.s32.totalorder %s12, 1
      %p72 = scmp.ne.s32.totalorder %s67, %s69
      %p73 = scmp.eq.s32.totalorder %s12, 0
      %p74 = por %p72, %p73
      %p75 = scmp.ne.s32.totalorder %s67, %s69
      %p76 = scmp.eq.s32.totalorder %s17, 1
      %p77 = por %p75, %p76
      %p78 = scmp.ne.s32.totalorder %s69, %s70
      %p79 = scmp.eq.s32.totalorder %s17, 0
      %p80 = por %p78, %p79
      %p81 = scmp.ne.s32.totalorder %s69, %s70
      %p82 = scmp.eq.s32.totalorder %s18, 1
      %p83 = por %p81, %p82
      %p85 = scmp.ne.s32.totalorder %s70, %s84
      %p86 = scmp.eq.s32.totalorder %s18, 0
      %p87 = por %p85, %p86
      %s88 = ssub.s32 %s12, %s19
      %p89 = scmp.eq.s32.totalorder %s88, 0
      %s91 = sadd.s32 %s90, 1
      %s92 = scalar_select %p89, %s90, %s91
      %p95 = pneg %p89
      %p96 = scmp.eq.s32.totalorder %s12, 1
      %p97 = por %p95, %p96
      %p98 = scmp.ne.s32.totalorder %s90, %s93
      %p99 = scmp.eq.s32.totalorder %s12, 0
      %p100 = por %p98, %p99
      %p101 = scmp.ne.s32.totalorder %s90, %s93
      %p102 = scmp.eq.s32.totalorder %s17, 1
      %p103 = por %p101, %p102
      %p104 = scmp.ne.s32.totalorder %s93, %s94
      %p105 = scmp.eq.s32.totalorder %s17, 0
      %p106 = por %p104, %p105
      %p107 = scmp.ne.s32.totalorder %s93, %s94
      %p108 = scmp.eq.s32.totalorder %s18, 1
      %p109 = por %p107, %p108
      %p111 = scmp.ne.s32.totalorder %s94, %s110
      %p112 = scmp.eq.s32.totalorder %s18, 0
      %p113 = por %p111, %p112
      %p114 = scmp.le.s32.totalorder 1, %s12
      %p115 = scmp.lt.s32.totalorder %s12, 3
      %p116 = pnand %p114, %p115
      %p117 = pneg %p116
      // Predicated region
      $region9: #{patch_merging_forward.1} parent=5 // pred_check
        _
      $region10: #{patch_merging_forward.1} parent=5 // pred_check_branch
        %119 = sbr.rel (%p116) target = $region12
      $region11: #{patch_merging_forward.1} parent=5 // pred_region
        %s120 = ssub.s32 %s12, 1
        // Predicated region
        $region13: #{patch_merging_forward.1} parent=11 // pred_check
          %p121 = pneg %p59
        $region14: #{patch_merging_forward.1} parent=11 // pred_check_branch
          %123 = sbr.rel (%p121) target = $region16
        $region15: #{patch_merging_forward.1} parent=11 // pred_region
          _
        $region16: #{patch_merging_forward.1} parent=11 // pred_fallthru
          _
        // Predicated region
        $region17: #{patch_merging_forward.1} parent=11 // pred_check
          %p124 = pneg %p80
        $region18: #{patch_merging_forward.1} parent=11 // pred_check_branch
          %126 = sbr.rel (%p124) target = $region20
        $region19: #{patch_merging_forward.1} parent=11 // pred_region
          _
        $region20: #{patch_merging_forward.1} parent=11 // pred_fallthru
          _
      $region12: #{patch_merging_forward.1} parent=5 // pred_fallthru
        _
      %p127 = scmp.lt.s32.totalorder %s12, 2
      // Predicated region
      $region21: #{patch_merging_forward.1} parent=5 // pred_check
        %p128 = pneg %p127
      $region22: #{patch_merging_forward.1} parent=5 // pred_check_branch
        %130 = sbr.rel (%p128) target = $region24
      $region23: #{patch_merging_forward.1} parent=5 // pred_region
        // Predicated region
        $region25: #{patch_merging_forward.1} parent=23 // pred_check
          %p131 = pneg %p32
        $region26: #{patch_merging_forward.1} parent=23 // pred_check_branch
          %133 = sbr.rel (%p131) target = $region28
        $region27: #{patch_merging_forward.1} parent=23 // pred_region
          %s134 = smul.u32 8, %s12
          %p135 = scmp.lt.s32.totalorder %s134, 15
          %s136 = scalar_select %p135, %s134, 15
          %s137 = smul.addr %s136, 2
          %s138 = smul.addr %s137, 8
          %s139 = scalar_lea.vmem %s0, %s138
          %s140 = smul.u32 8, %s12
        $region28: #{patch_merging_forward.1} parent=23 // pred_fallthru
          _
      $region24: #{patch_merging_forward.1} parent=5 // pred_fallthru
        _
      %p141 = scmp.le.s32.totalorder 1, %s12
      %p142 = scmp.lt.s32.totalorder %s12, 3
      %p143 = pnand %p141, %p142
      %p144 = pneg %p143
      // Predicated region
      $region29: #{patch_merging_forward.1} parent=5 // pred_check
        _
      $region30: #{patch_merging_forward.1} parent=5 // pred_check_branch
        %146 = sbr.rel (%p143) target = $region32
      $region31: #{patch_merging_forward.1} parent=5 // pred_region
        %s147 = ssub.s32 %s12, 1
        %s148 = smul.u32 8, %s17
        %p149 = scmp.lt.s32.totalorder %s148, 15
        %s150 = scalar_select %p149, %s148, 15
        %s151 = smul.addr %s150, 2
        %s152 = smul.addr %s151, 8
        %s153 = scalar_lea.vmem %s0, %s152
        %p154 = pneg %p38
        %p155 = pneg %p35
        %p156 = pneg %p59
        %p157 = pneg %p56
        %p158 = pneg %p80
        %p159 = pneg %p77
        %p160 = pneg %p106
        %p161 = pneg %p103
        %s162 = sand.u32 %s93, 1
        %s163 = scalar_lea.sflag [#allocation3], %s162
        %s164 = sand.u32 %s93, 1
        %s165 = smul.addr %s164, 64
        %s166 = scalar_lea.vmem [#allocation2], %s165
        %s167 = smul.u32 8, %s17
        %p168 = scmp.lt.s32.totalorder %s167, 15
        %s169 = scalar_select %p168, %s167, 15
        %s170 = smul.addr %s169, 2
        %s171 = smul.addr %s170, 8
        %s172 = scalar_lea.vmem %s0, %s171
        %s173 = smul.u32 8, %s17
        %s174 = smul.u32 8, %s17
        %v175 = vld [vmem:[%s172] sm:$0xff]
        %v176 = vld [vmem:[%s172 + $0x8] sm:$0xff]
        %v177 = vld [vmem:[%s172 + $0x10] sm:$0xff]
        %v178 = vld [vmem:[%s172 + $0x18] sm:$0xff]
        %v179 = vld [vmem:[%s172 + $0x20] sm:$0xff]
        %v180 = vld [vmem:[%s172 + $0x28] sm:$0xff]
        %v181 = vld [vmem:[%s172 + $0x30] sm:$0xff]
        %v182 = vld [vmem:[%s172 + $0x38] sm:$0xff]
        %v183 = vld [vmem:[%s172 + $0x40] sm:$0xff]
        %v184 = vld [vmem:[%s172 + $0x48] sm:$0xff]
        %v185 = vld [vmem:[%s172 + $0x50] sm:$0xff]
        %v186 = vld [vmem:[%s172 + $0x58] sm:$0xff]
        %v187 = vld [vmem:[%s172 + $0x60] sm:$0xff]
        %v188 = vld [vmem:[%s172 + $0x68] sm:$0xff]
        %v189 = vld [vmem:[%s172 + $0x70] sm:$0xff]
        %v190 = vld [vmem:[%s172 + $0x78] sm:$0xff]
        %vm191 = vcmask 523264
        %v192 = vsel %vm191, %v175, 0.0
        %193 = vadd.xlane.f32.xlu0 %v192
        %v194 = vpop.xlane.xlu0 %193
        %v195 = vsel %vm191, %v177, 0.0
        %196 = vadd.xlane.f32.xlu0 %v195
        %v197 = vpop.xlane.xlu0 %196
        %v198 = vsel %vm191, %v179, 0.0
        %199 = vadd.xlane.f32.xlu0 %v198
        %v200 = vpop.xlane.xlu0 %199
        %v201 = vsel %vm191, %v181, 0.0
        %202 = vadd.xlane.f32.xlu0 %v201
        %v203 = vpop.xlane.xlu0 %202
        %v204 = vsel %vm191, %v183, 0.0
        %205 = vadd.xlane.f32.xlu0 %v204
        %v206 = vpop.xlane.xlu0 %205
        %v207 = vsel %vm191, %v185, 0.0
        %208 = vadd.xlane.f32.xlu0 %v207
        %v209 = vpop.xlane.xlu0 %208
        %v210 = vsel %vm191, %v187, 0.0
        %211 = vadd.xlane.f32.xlu0 %v210
        %v212 = vpop.xlane.xlu0 %211
        %v213 = vsel %vm191, %v189, 0.0
        %214 = vadd.xlane.f32.xlu0 %v213
        %v215 = vpop.xlane.xlu0 %214
        %v216 = vsel %vm191, %v176, 0.0
        %217 = vadd.xlane.f32.xlu0 %v216
        %v218 = vpop.xlane.xlu0 %217
        %v219 = vsel %vm191, %v178, 0.0
        %220 = vadd.xlane.f32.xlu0 %v219
        %v221 = vpop.xlane.xlu0 %220
        %v222 = vsel %vm191, %v180, 0.0
        %223 = vadd.xlane.f32.xlu0 %v222
        %v224 = vpop.xlane.xlu0 %223
        %v225 = vsel %vm191, %v182, 0.0
        %226 = vadd.xlane.f32.xlu0 %v225
        %v227 = vpop.xlane.xlu0 %226
        %v228 = vsel %vm191, %v184, 0.0
        %229 = vadd.xlane.f32.xlu0 %v228
        %v230 = vpop.xlane.xlu0 %229
        %v231 = vsel %vm191, %v186, 0.0
        %232 = vadd.xlane.f32.xlu0 %v231
        %v233 = vpop.xlane.xlu0 %232
        %v234 = vsel %vm191, %v188, 0.0
        %235 = vadd.xlane.f32.xlu0 %v234
        %v236 = vpop.xlane.xlu0 %235
        %v237 = vsel %vm191, %v190, 0.0
        %238 = vadd.xlane.f32.xlu0 %v237
        %v239 = vpop.xlane.xlu0 %238
        %v240 = vadd.f32 %v194, %v218
        %v241 = vadd.f32 %v197, %v221
        %v242 = vadd.f32 %v200, %v224
        %v243 = vadd.f32 %v203, %v227
        %v244 = vadd.f32 %v206, %v230
        %v245 = vadd.f32 %v209, %v233
        %v246 = vadd.f32 %v212, %v236
        %v247 = vadd.f32 %v215, %v239
        %v248 = vmul.f32 %v240, 0.0078125
        %v249 = vmul.f32 %v241, 0.0078125
        %v250 = vmul.f32 %v242, 0.0078125
        %v251 = vmul.f32 %v243, 0.0078125
        %v252 = vmul.f32 %v244, 0.0078125
        %v253 = vmul.f32 %v245, 0.0078125
        %v254 = vmul.f32 %v246, 0.0078125
        %v255 = vmul.f32 %v247, 0.0078125
        %v256 = vsub.f32 %v175, %v248
        %v257 = vsub.f32 %v177, %v249
        %v258 = vsub.f32 %v179, %v250
        %v259 = vsub.f32 %v181, %v251
        %v260 = vsub.f32 %v183, %v252
        %v261 = vsub.f32 %v185, %v253
        %v262 = vsub.f32 %v187, %v254
        %v263 = vsub.f32 %v189, %v255
        %v264 = vsub.f32 %v176, %v248
        %v265 = vsub.f32 %v178, %v249
        %v266 = vsub.f32 %v180, %v250
        %v267 = vsub.f32 %v182, %v251
        %v268 = vsub.f32 %v184, %v252
        %v269 = vsub.f32 %v186, %v253
        %v270 = vsub.f32 %v188, %v254
        %v271 = vsub.f32 %v190, %v255
        %v272 = vmul.f32 %v256, %v256
        %v273 = vmul.f32 %v257, %v257
        %v274 = vmul.f32 %v258, %v258
        %v275 = vmul.f32 %v259, %v259
        %v276 = vmul.f32 %v260, %v260
        %v277 = vmul.f32 %v261, %v261
        %v278 = vmul.f32 %v262, %v262
        %v279 = vmul.f32 %v263, %v263
        %v280 = vsel %vm191, %v272, 0.0
        %281 = vadd.xlane.f32.xlu0 %v280
        %v282 = vpop.xlane.xlu0 %281
        %v283 = vsel %vm191, %v273, 0.0
        %284 = vadd.xlane.f32.xlu0 %v283
        %v285 = vpop.xlane.xlu0 %284
        %v286 = vsel %vm191, %v274, 0.0
        %287 = vadd.xlane.f32.xlu0 %v286
        %v288 = vpop.xlane.xlu0 %287
        %v289 = vsel %vm191, %v275, 0.0
        %290 = vadd.xlane.f32.xlu0 %v289
        %v291 = vpop.xlane.xlu0 %290
        %v292 = vsel %vm191, %v276, 0.0
        %293 = vadd.xlane.f32.xlu0 %v292
        %v294 = vpop.xlane.xlu0 %293
        %v295 = vsel %vm191, %v277, 0.0
        %296 = vadd.xlane.f32.xlu0 %v295
        %v297 = vpop.xlane.xlu0 %296
        %v298 = vsel %vm191, %v278, 0.0
        %299 = vadd.xlane.f32.xlu0 %v298
        %v300 = vpop.xlane.xlu0 %299
        %v301 = vsel %vm191, %v279, 0.0
        %302 = vadd.xlane.f32.xlu0 %v301
        %v303 = vpop.xlane.xlu0 %302
        %v304 = vmul.f32 %v264, %v264
        %v305 = vmul.f32 %v265, %v265
        %v306 = vmul.f32 %v266, %v266
        %v307 = vmul.f32 %v267, %v267
        %v308 = vmul.f32 %v268, %v268
        %v309 = vmul.f32 %v269, %v269
        %v310 = vmul.f32 %v270, %v270
        %v311 = vmul.f32 %v271, %v271
        %v312 = vsel %vm191, %v304, 0.0
        %313 = vadd.xlane.f32.xlu0 %v312
        %v314 = vpop.xlane.xlu0 %313
        %v315 = vsel %vm191, %v305, 0.0
        %316 = vadd.xlane.f32.xlu0 %v315
        %v317 = vpop.xlane.xlu0 %316
        %v318 = vsel %vm191, %v306, 0.0
        %319 = vadd.xlane.f32.xlu0 %v318
        %v320 = vpop.xlane.xlu0 %319
        %v321 = vsel %vm191, %v307, 0.0
        %322 = vadd.xlane.f32.xlu0 %v321
        %v323 = vpop.xlane.xlu0 %322
        %v324 = vsel %vm191, %v308, 0.0
        %325 = vadd.xlane.f32.xlu0 %v324
        %v326 = vpop.xlane.xlu0 %325
        %v327 = vsel %vm191, %v309, 0.0
        %328 = vadd.xlane.f32.xlu0 %v327
        %v329 = vpop.xlane.xlu0 %328
        %v330 = vsel %vm191, %v310, 0.0
        %331 = vadd.xlane.f32.xlu0 %v330
        %v332 = vpop.xlane.xlu0 %331
        %v333 = vsel %vm191, %v311, 0.0
        %334 = vadd.xlane.f32.xlu0 %v333
        %v335 = vpop.xlane.xlu0 %334
        %v336 = vadd.f32 %v282, %v314
        %v337 = vadd.f32 %v285, %v317
        %v338 = vadd.f32 %v288, %v320
        %v339 = vadd.f32 %v291, %v323
        %v340 = vadd.f32 %v294, %v326
        %v341 = vadd.f32 %v297, %v329
        %v342 = vadd.f32 %v300, %v332
        %v343 = vadd.f32 %v303, %v335
        %v344 = vmul.f32 %v336, 0.0078125
        %v345 = vmul.f32 %v337, 0.0078125
        %v346 = vmul.f32 %v338, 0.0078125
        %v347 = vmul.f32 %v339, 0.0078125
        %v348 = vmul.f32 %v340, 0.0078125
        %v349 = vmul.f32 %v341, 0.0078125
        %v350 = vmul.f32 %v342, 0.0078125
        %v351 = vmul.f32 %v343, 0.0078125
        %v352 = vadd.f32 %v344, 1e-05
        %v353 = vadd.f32 %v345, 1e-05
        %v354 = vadd.f32 %v346, 1e-05
        %v355 = vadd.f32 %v347, 1e-05
        %v356 = vadd.f32 %v348, 1e-05
        %v357 = vadd.f32 %v349, 1e-05
        %v358 = vadd.f32 %v350, 1e-05
        %v359 = vadd.f32 %v351, 1e-05
        %v360 = vrsqrt.pop %v352
        %v361 = vrsqrt.pop %v353
        %v362 = vrsqrt.pop %v354
        %v363 = vrsqrt.pop %v355
        %v364 = vrsqrt.pop %v356
        %v365 = vrsqrt.pop %v357
        %v366 = vrsqrt.pop %v358
        %v367 = vrsqrt.pop %v359
        %v368 = vld [vmem:[%s1] sm:$0xff]
        %v369 = vld [vmem:[%s1 + $0x8] sm:$0xff]
        %v370 = vld [vmem:[%s1 + $0x10] sm:$0xff]
        %v371 = vld [vmem:[%s1 + $0x18] sm:$0xff]
        %v372 = vld [vmem:[%s1 + $0x20] sm:$0xff]
        %v373 = vld [vmem:[%s1 + $0x28] sm:$0xff]
        %v374 = vld [vmem:[%s1 + $0x30] sm:$0xff]
        %v375 = vld [vmem:[%s1 + $0x38] sm:$0xff]
        %s376 = scalar_lea.vmem %s1, 64
        %v377 = vld [vmem:[%s376] sm:$0xff]
        %v378 = vld [vmem:[%s376 + $0x8] sm:$0xff]
        %v379 = vld [vmem:[%s376 + $0x10] sm:$0xff]
        %v380 = vld [vmem:[%s376 + $0x18] sm:$0xff]
        %v381 = vld [vmem:[%s376 + $0x20] sm:$0xff]
        %v382 = vld [vmem:[%s376 + $0x28] sm:$0xff]
        %v383 = vld [vmem:[%s376 + $0x30] sm:$0xff]
        %v384 = vld [vmem:[%s376 + $0x38] sm:$0xff]
        %v386 = vsel %vm191, %v264, 0
        %v389 = vsel %vm191, %v265, 0
        %v392 = vsel %vm191, %v266, 0
        %v395 = vsel %vm191, %v267, 0
        %v398 = vsel %vm191, %v268, 0
        %v401 = vsel %vm191, %v269, 0
        %v404 = vsel %vm191, %v270, 0
        %v407 = vsel %vm191, %v271, 0
        %409 = vmatprep.subr.mxu0 0.0
        %410 = vmatpush1.msra.mxu0 0.0
        %411 = vmatprep.subr.mxu0 0.0
        %412 = vmatpush1.msra.mxu0 0.0
        %413 = vmatprep.subr.mxu0 0.0
        %414 = vmatpush1.msra.mxu0 0.0
        %415 = vmatprep.subr.mxu0 0.0
        %416 = vmatpush1.msra.mxu0 0.0
        %417 = vmatprep.subr.mxu0 0.0
        %418 = vmatpush1.msra.mxu0 0.0
        %419 = vmatprep.subr.mxu0 0.0
        %420 = vmatpush1.msra.mxu0 0.0
        %421 = vmatprep.subr.mxu0 0.0
        %422 = vmatpush1.msra.mxu0 0.0
        %423 = vmatprep.subr.mxu0 0.0
        %424 = vmatpush1.msra.mxu0 0.0
        %425 = vmatprep.subr.mxu0 0.0
        %426 = vmatpush1.msra.mxu0 %v384
        %427 = vmatprep.subr.mxu0 0.0
        %428 = vmatpush1.msra.mxu0 %v383
        %429 = vmatprep.subr.mxu0 0.0
        %430 = vmatpush1.msra.mxu0 %v382
        %431 = vmatprep.subr.mxu0 0.0
        %432 = vmatpush1.msra.mxu0 %v381
        %433 = vmatprep.subr.mxu0 0.0
        %434 = vmatpush1.msra.mxu0 %v380
        %435 = vmatprep.subr.mxu0 0.0
        %436 = vmatpush1.msra.mxu0 %v379
        %437 = vmatprep.subr.mxu0 0.0
        %438 = vmatpush1.msra.mxu0 %v378
        %439 = vmatprep.subr.mxu0 0.0
        %440 = vmatpush1.msra.mxu0 %v377
        %441 = vmatprep.subr.mxu0 0.0
        %442 = vmatpush2.msra.mxu0 0.0
        %443 = vmatprep.subr.mxu0 0.0
        %444 = vmatpush2.msra.mxu0 0.0
        %445 = vmatprep.subr.mxu0 0.0
        %446 = vmatpush2.msra.mxu0 0.0
        %447 = vmatprep.subr.mxu0 0.0
        %448 = vmatpush2.msra.mxu0 0.0
        %449 = vmatprep.subr.mxu0 0.0
        %450 = vmatpush2.msra.mxu0 0.0
        %451 = vmatprep.subr.mxu0 0.0
        %452 = vmatpush2.msra.mxu0 0.0
        %453 = vmatprep.subr.mxu0 0.0
        %454 = vmatpush2.msra.mxu0 0.0
        %455 = vmatprep.subr.mxu0 0.0
        %456 = vmatpush2.msra.mxu0 0.0
        %457 = vmatprep.subr.mxu0 0.0
        %458 = vmatpush2.msra.mxu0 0.0
        %459 = vmatprep.subr.mxu0 0.0
        %460 = vmatpush2.msra.mxu0 0.0
        %461 = vmatprep.subr.mxu0 0.0
        %462 = vmatpush2.msra.mxu0 0.0
        %463 = vmatprep.subr.mxu0 0.0
        %464 = vmatpush2.msra.mxu0 0.0
        %465 = vmatprep.subr.mxu0 0.0
        %466 = vmatpush2.msra.mxu0 0.0
        %467 = vmatprep.subr.mxu0 0.0
        %468 = vmatpush2.msra.mxu0 0.0
        %469 = vmatprep.subr.mxu0 0.0
        %470 = vmatpush2.msra.mxu0 0.0
        %471 = vmatprep.subr.mxu0 0.0
        %472 = vmatpush2.msra.mxu0 0.0
        %473 = vmatprep.mubr.f32.mxu0 0.0
        %474 = vmatmul.mubr.f32.gmra.mxu0 %v386
        %v475 = vpop.f32.mrf.mxu0
        %v476 = vadd.f32 0.0, %v475
        %v477 = vpop.f32.mrf.mxu0
        %478 = vmatprep.mubr.f32.mxu0 0.0
        %479 = vmatmul.mubr.f32.gmra.mxu0 %v389
        %v480 = vpop.f32.mrf.mxu0
        %v481 = vadd.f32 0.0, %v480
        %v482 = vpop.f32.mrf.mxu0
        %483 = vmatprep.mubr.f32.mxu0 0.0
        %484 = vmatmul.mubr.f32.gmra.mxu0 %v392
        %v485 = vpop.f32.mrf.mxu0
        %v486 = vadd.f32 0.0, %v485
        %v487 = vpop.f32.mrf.mxu0
        %488 = vmatprep.mubr.f32.mxu0 0.0
        %489 = vmatmul.mubr.f32.gmra.mxu0 %v395
        %v490 = vpop.f32.mrf.mxu0
        %v491 = vadd.f32 0.0, %v490
        %v492 = vpop.f32.mrf.mxu0
        %493 = vmatprep.mubr.f32.mxu0 0.0
        %494 = vmatmul.mubr.f32.gmra.mxu0 %v398
        %v495 = vpop.f32.mrf.mxu0
        %v496 = vadd.f32 0.0, %v495
        %v497 = vpop.f32.mrf.mxu0
        %498 = vmatprep.mubr.f32.mxu0 0.0
        %499 = vmatmul.mubr.f32.gmra.mxu0 %v401
        %v500 = vpop.f32.mrf.mxu0
        %v501 = vadd.f32 0.0, %v500
        %v502 = vpop.f32.mrf.mxu0
        %503 = vmatprep.mubr.f32.mxu0 0.0
        %504 = vmatmul.mubr.f32.gmra.mxu0 %v404
        %v505 = vpop.f32.mrf.mxu0
        %v506 = vadd.f32 0.0, %v505
        %v507 = vpop.f32.mrf.mxu0
        %508 = vmatprep.mubr.f32.mxu0 0.0
        %509 = vmatmul.mubr.f32.gmra.mxu0 %v407
        %v510 = vpop.f32.mrf.mxu0
        %v511 = vadd.f32 0.0, %v510
        %v512 = vpop.f32.mrf.mxu0
        %513 = vdwg.mxu0
        %v515 = vsel %vm191, %v256, 0
        %v518 = vsel %vm191, %v257, 0
        %v521 = vsel %vm191, %v258, 0
        %v524 = vsel %vm191, %v259, 0
        %v527 = vsel %vm191, %v260, 0
        %v530 = vsel %vm191, %v261, 0
        %v533 = vsel %vm191, %v262, 0
        %v536 = vsel %vm191, %v263, 0
        %538 = vmatprep.subr.mxu0 0.0
        %539 = vmatpush1.msra.mxu0 0.0
        %540 = vmatprep.subr.mxu0 0.0
        %541 = vmatpush1.msra.mxu0 0.0
        %542 = vmatprep.subr.mxu0 0.0
        %543 = vmatpush1.msra.mxu0 0.0
        %544 = vmatprep.subr.mxu0 0.0
        %545 = vmatpush1.msra.mxu0 0.0
        %546 = vmatprep.subr.mxu0 0.0
        %547 = vmatpush1.msra.mxu0 0.0
        %548 = vmatprep.subr.mxu0 0.0
        %549 = vmatpush1.msra.mxu0 0.0
        %550 = vmatprep.subr.mxu0 0.0
        %551 = vmatpush1.msra.mxu0 0.0
        %552 = vmatprep.subr.mxu0 0.0
        %553 = vmatpush1.msra.mxu0 0.0
        %554 = vmatprep.subr.mxu0 0.0
        %555 = vmatpush1.msra.mxu0 %v375
        %556 = vmatprep.subr.mxu0 0.0
        %557 = vmatpush1.msra.mxu0 %v374
        %558 = vmatprep.subr.mxu0 0.0
        %559 = vmatpush1.msra.mxu0 %v373
        %560 = vmatprep.subr.mxu0 0.0
        %561 = vmatpush1.msra.mxu0 %v372
        %562 = vmatprep.subr.mxu0 0.0
        %563 = vmatpush1.msra.mxu0 %v371
        %564 = vmatprep.subr.mxu0 0.0
        %565 = vmatpush1.msra.mxu0 %v370
        %566 = vmatprep.subr.mxu0 0.0
        %567 = vmatpush1.msra.mxu0 %v369
        %568 = vmatprep.subr.mxu0 0.0
        %569 = vmatpush1.msra.mxu0 %v368
        %570 = vmatprep.subr.mxu0 0.0
        %571 = vmatpush2.msra.mxu0 0.0
        %572 = vmatprep.subr.mxu0 0.0
        %573 = vmatpush2.msra.mxu0 0.0
        %574 = vmatprep.subr.mxu0 0.0
        %575 = vmatpush2.msra.mxu0 0.0
        %576 = vmatprep.subr.mxu0 0.0
        %577 = vmatpush2.msra.mxu0 0.0
        %578 = vmatprep.subr.mxu0 0.0
        %579 = vmatpush2.msra.mxu0 0.0
        %580 = vmatprep.subr.mxu0 0.0
        %581 = vmatpush2.msra.mxu0 0.0
        %582 = vmatprep.subr.mxu0 0.0
        %583 = vmatpush2.msra.mxu0 0.0
        %584 = vmatprep.subr.mxu0 0.0
        %585 = vmatpush2.msra.mxu0 0.0
        %586 = vmatprep.subr.mxu0 0.0
        %587 = vmatpush2.msra.mxu0 0.0
        %588 = vmatprep.subr.mxu0 0.0
        %589 = vmatpush2.msra.mxu0 0.0
        %590 = vmatprep.subr.mxu0 0.0
        %591 = vmatpush2.msra.mxu0 0.0
        %592 = vmatprep.subr.mxu0 0.0
        %593 = vmatpush2.msra.mxu0 0.0
        %594 = vmatprep.subr.mxu0 0.0
        %595 = vmatpush2.msra.mxu0 0.0
        %596 = vmatprep.subr.mxu0 0.0
        %597 = vmatpush2.msra.mxu0 0.0
        %598 = vmatprep.subr.mxu0 0.0
        %599 = vmatpush2.msra.mxu0 0.0
        %600 = vmatprep.subr.mxu0 0.0
        %601 = vmatpush2.msra.mxu0 0.0
        %602 = vmatprep.mubr.f32.mxu0 0.0
        %603 = vmatmul.mubr.f32.gmra.mxu0 %v515
        %v604 = vpop.f32.mrf.mxu0
        %v605 = vadd.f32 %v476, %v604
        %v606 = vpop.f32.mrf.mxu0
        %607 = vmatprep.mubr.f32.mxu0 0.0
        %608 = vmatmul.mubr.f32.gmra.mxu0 %v518
        %v609 = vpop.f32.mrf.mxu0
        %v610 = vadd.f32 %v481, %v609
        %v611 = vpop.f32.mrf.mxu0
        %612 = vmatprep.mubr.f32.mxu0 0.0
        %613 = vmatmul.mubr.f32.gmra.mxu0 %v521
        %v614 = vpop.f32.mrf.mxu0
        %v615 = vadd.f32 %v486, %v614
        %v616 = vpop.f32.mrf.mxu0
        %617 = vmatprep.mubr.f32.mxu0 0.0
        %618 = vmatmul.mubr.f32.gmra.mxu0 %v524
        %v619 = vpop.f32.mrf.mxu0
        %v620 = vadd.f32 %v491, %v619
        %v621 = vpop.f32.mrf.mxu0
        %622 = vmatprep.mubr.f32.mxu0 0.0
        %623 = vmatmul.mubr.f32.gmra.mxu0 %v527
        %v624 = vpop.f32.mrf.mxu0
        %v625 = vadd.f32 %v496, %v624
        %v626 = vpop.f32.mrf.mxu0
        %627 = vmatprep.mubr.f32.mxu0 0.0
        %628 = vmatmul.mubr.f32.gmra.mxu0 %v530
        %v629 = vpop.f32.mrf.mxu0
        %v630 = vadd.f32 %v501, %v629
        %v631 = vpop.f32.mrf.mxu0
        %632 = vmatprep.mubr.f32.mxu0 0.0
        %633 = vmatmul.mubr.f32.gmra.mxu0 %v533
        %v634 = vpop.f32.mrf.mxu0
        %v635 = vadd.f32 %v506, %v634
        %v636 = vpop.f32.mrf.mxu0
        %637 = vmatprep.mubr.f32.mxu0 0.0
        %638 = vmatmul.mubr.f32.gmra.mxu0 %v536
        %v639 = vpop.f32.mrf.mxu0
        %v640 = vadd.f32 %v511, %v639
        %v641 = vpop.f32.mrf.mxu0
        %642 = vdwg.mxu0
        %v643 = vmul.f32 %v605, %v360
        %v644 = vmul.f32 %v610, %v361
        %v645 = vmul.f32 %v615, %v362
        %v646 = vmul.f32 %v620, %v363
        %v647 = vmul.f32 %v625, %v364
        %v648 = vmul.f32 %v630, %v365
        %v649 = vmul.f32 %v635, %v366
        %v650 = vmul.f32 %v640, %v367
        %v651 = vld [vmem:[%s2] sm:$0x1]
        %v653 = vlaneseq
        %v654 = vshrl.u32 %v653, 7
        %v655 = vsub.s32 0, %v654
        %v656 = vrot.slane %v651, %v655
        %v658 = vadd.f32 %v643, %v656
        %v659 = vadd.f32 %v644, %v656
        %v660 = vadd.f32 %v645, %v656
        %v661 = vadd.f32 %v646, %v656
        %v662 = vadd.f32 %v647, %v656
        %v663 = vadd.f32 %v648, %v656
        %v664 = vadd.f32 %v649, %v656
        %v665 = vadd.f32 %v650, %v656
        %666 = vst.msk [vmem:[%s166] sm:$0xff] %vm191, %v658
        %667 = vst.msk [vmem:[%s166 + $0x8] sm:$0xff] %vm191, %v659
        %668 = vst.msk [vmem:[%s166 + $0x10] sm:$0xff] %vm191, %v660
        %669 = vst.msk [vmem:[%s166 + $0x18] sm:$0xff] %vm191, %v661
        %670 = vst.msk [vmem:[%s166 + $0x20] sm:$0xff] %vm191, %v662
        %671 = vst.msk [vmem:[%s166 + $0x28] sm:$0xff] %vm191, %v663
        %672 = vst.msk [vmem:[%s166 + $0x30] sm:$0xff] %vm191, %v664
        %673 = vst.msk [vmem:[%s166 + $0x38] sm:$0xff] %vm191, %v665
        %s674 = sand.u32 %s93, 1
        %s675 = scalar_lea.sflag [#allocation3], %s674
        %s676 = sand.u32 %s93, 1
        %s677 = smul.addr %s676, 64
        %s678 = scalar_lea.vmem [#allocation2], %s677
        // Predicated region
        $region33: #{patch_merging_forward.1} parent=31 // pred_check
          %p679 = pneg %p103
        $region34: #{patch_merging_forward.1} parent=31 // pred_check_branch
          %681 = sbr.rel (%p679) target = $region36
        $region35: #{patch_merging_forward.1} parent=31 // pred_region
          %s682 = smul.u32 8, %s17
          %s684 = ssub.s32 1024, 1024
          %685 = vsyncadd %s675, %s684
          %s686 = smul.addr %s682, 128
          %s687 = scalar_lea.hbm %s3, %s686
          %s688 = sshll.u32 %s678, 4
          %s689 = int_to_ptr.vmem [resolvable:$true] %s688
          %694 = dma.vmem_to_hbm [thread:$0]  %s689, 1024, %s687, %s675, 128, 128, 8
        $region36: #{patch_merging_forward.1} parent=31 // pred_fallthru
          _
      $region32: #{patch_merging_forward.1} parent=5 // pred_fallthru
        _
      %p695 = scmp.le.s32.totalorder 2, %s12
      // Predicated region
      $region37: #{patch_merging_forward.1} parent=5 // pred_check
        %p696 = pneg %p695
      $region38: #{patch_merging_forward.1} parent=5 // pred_check_branch
        %698 = sbr.rel (%p696) target = $region40
      $region39: #{patch_merging_forward.1} parent=5 // pred_region
        %s699 = ssub.s32 %s12, 2
        // Predicated region
        $region41: #{patch_merging_forward.1} parent=39 // pred_check
          %p700 = pneg %p109
        $region42: #{patch_merging_forward.1} parent=39 // pred_check_branch
          %702 = sbr.rel (%p700) target = $region44
        $region43: #{patch_merging_forward.1} parent=39 // pred_region
          %s703 = sand.u32 %s94, 1
          %s704 = scalar_lea.sflag [#allocation3], %s703
          %s705 = sand.u32 %s94, 1
          %s706 = smul.addr %s705, 64
          %s707 = scalar_lea.vmem [#allocation2], %s706
          %708 = dma.done %s704, 1024
        $region44: #{patch_merging_forward.1} parent=39 // pred_fallthru
          _
      $region40: #{patch_merging_forward.1} parent=5 // pred_fallthru
        _
    $region6: #{patch_merging_forward.1} parent=1 // loop_footer
      %s16 = sadd.s32 1, %s12
    $region7: #{patch_merging_forward.1} parent=1 // loop_footer_branch
      %11 = sbr.rel target = $region3
    $region8: #{patch_merging_forward.1} parent=1 // loop_exit
      _
    %709 = vsyncpa [#allocation3], 1
    %s710 = scalar_lea.sflag [#allocation3], 1
    %711 = vsyncpa %s710, 1

</llo_original>
